<compile_context>
chip_gen: v7x
topology: tpu7x:2x2x1
jax: 0.10.0
libtpu: 0.0.40
codegen_flags: <defaults>
</compile_context>

<pallas_src>
import math

import jax
import jax.numpy as jnp
from jax.experimental import pallas as pl
from jax.experimental.pallas import tpu as pltpu

IN_FEATURES = 17
HIDDEN = 10
OUT_FEATURES = 1

# Rows of the batch per grid step (multiple of 128).  x tile in VMEM is
# lane-padded to tb*512 B; with intermediates the kernel uses ~2.1 KB/row,
# so 8192 rows ~= 17 MiB (hence vmem_limit_bytes below).  Sweep 4k-16k.
DEFAULT_BLOCK_BATCH = 8192
# Cap the tile so big batches produce at least this many grid steps
# ("parallel" axis -> both TensorCores on v7x get work).
MIN_GRID_STEPS = 4


def _round_up(n: int, m: int) -> int:
    return ((n + m - 1) // m) * m


def _cdiv(n: int, m: int) -> int:
    return (n + m - 1) // m


def _ann_kernel(x_ref, w1_ref, b1_ref, w2_ref, b2_ref, o_ref):
    # x_ref:  (tb, 17)  VMEM tile of the batch (rows on sublanes)
    # w1_ref: (17, 10)  VMEM, resident across all grid steps
    # b1_ref: (1, 10)   VMEM
    # w2_ref: (1, 10)   VMEM (layer-2 weights as a row)
    # b2_ref: (1, 1)    SMEM scalar (f32)
    # o_ref:  (1, tb)   VMEM, lane-dense output row (batch on lanes)
    x = x_ref[...]
    # Layer 1 on the MXU, f32 accumulation.
    h = jnp.dot(x, w1_ref[...], preferred_element_type=jnp.float32)   # (tb, 10)
    h = jnp.maximum(h + b1_ref[...], 0.0)                              # bias + ReLU
    # Layer 2 as the q @ k^T-style contraction (1,H) x (tb,H) -> (1,tb):
    # the batch ends up on lanes, so the store below is a dense unmasked vst
    # and the HBM writeback is a contiguous tb*4 B DMA (vs. ~tb/8 masked
    # stores + a tb*512 B out buffer with a (tb, 1) layout).
    y = jnp.einsum("oh,bh->ob", w2_ref[...], h,
                   preferred_element_type=jnp.float32)                 # (1, tb)
    o_ref[...] = (y + b2_ref[0, 0]).astype(o_ref.dtype)


def ann_forward(x, w1, b1, w2, b2, *, block_batch: int = DEFAULT_BLOCK_BATCH):
    """Forward pass of ANN.

    x: (B, 17); w1: (17, 10); b1: (10,); w2: (10, 1); b2: (1,). Returns (B, 1).
    """
    B, F = x.shape
    assert F == IN_FEATURES, f"expected {IN_FEATURES} input features, got {F}"
    orig_b = B

    block_batch = max(128, _round_up(block_batch, 128))

    if B < 128:
        # Tiny batch: pad to one 128-row tile so every in-kernel shape stays
        # (8,128)-aligned.  Copy cost is negligible here; the large-batch
        # path below never pads x.
        x = jnp.pad(x, ((0, 128 - B), (0, 0)))
        B = 128
        tb = 128
    else:
        # Biggest tile that (a) is a multiple of 128 (lane-dense out block),
        # (b) fits the VMEM budget, and (c) leaves >= MIN_GRID_STEPS steps.
        tb = min(block_batch, _round_up(_cdiv(B, MIN_GRID_STEPS), 128))

    grid = (_cdiv(B, tb),)   # ragged last block handled by Pallas (no x pad)

    b1_2d = b1.reshape(1, HIDDEN)
    w2_row = w2.reshape(1, HIDDEN)                       # (10, 1) -> (1, 10)
    b2_2d = b2.reshape(1, 1).astype(jnp.float32)         # SMEM scalars are 32-bit

    # Advisory cost: ~memory-bound, ~360 flops/row.
    flops = B * (2 * IN_FEATURES * HIDDEN + 2 * HIDDEN + 2)
    bytes_accessed = B * (IN_FEATURES + OUT_FEATURES) * 4 + \
        (IN_FEATURES * HIDDEN + 2 * HIDDEN + 1) * 4

    out = pl.pallas_call(
        _ann_kernel,
        out_shape=jax.ShapeDtypeStruct((1, B), x.dtype),
        grid=grid,
        in_specs=[
            # x: one (tb, 17) tile per grid step, auto double-buffered.
            pl.BlockSpec((tb, IN_FEATURES), lambda i: (i, 0)),
            # Weights / bias: constant index_map -> VMEM resident.
            pl.BlockSpec((IN_FEATURES, HIDDEN), lambda i: (0, 0)),
            pl.BlockSpec((1, HIDDEN), lambda i: (0, 0)),
            pl.BlockSpec((1, HIDDEN), lambda i: (0, 0)),
            # b2 is a single scalar -> SMEM.
            pl.BlockSpec(memory_space=pltpu.SMEM),
        ],
        # Lane-dense output row: (1, tb) blocks of a (1, B) array.
        out_specs=pl.BlockSpec((1, tb), lambda i: (0, i)),
        compiler_params=pltpu.CompilerParams(
            dimension_semantics=("parallel",),
            # Raise the scoped-VMEM limit (v5e defaults to ~16 MiB) so the
            # 8192-row lane-padded x tile + matmul intermediates fit.
            vmem_limit_bytes=32 * 1024 * 1024,
        ),
        cost_estimate=pl.CostEstimate(
            flops=flops, transcendentals=0, bytes_accessed=bytes_accessed),
    )(x, w1, b1_2d, w2_row, b2_2d)

    # (1, B) lane-dense row -> (B, 1); drop any padded columns.
    return out[0, :orig_b].reshape(orig_b, OUT_FEATURES)


def init_ann_params(key):
    """Deterministic init mimicking nn.Linear's U(-1/sqrt(fan_in), 1/sqrt(fan_in))."""
    k1, k2, k3, k4 = jax.random.split(key, 4)
    bound1 = 1.0 / math.sqrt(float(IN_FEATURES))
    bound2 = 1.0 / math.sqrt(float(HIDDEN))
    w1 = jax.random.uniform(k1, (IN_FEATURES, HIDDEN), jnp.float32, -bound1, bound1)
    b1 = jax.random.uniform(k2, (HIDDEN,), jnp.float32, -bound1, bound1)
    w2 = jax.random.uniform(k3, (HIDDEN, OUT_FEATURES), jnp.float32, -bound2, bound2)
    b2 = jax.random.uniform(k4, (OUT_FEATURES,), jnp.float32, -bound2, bound2)
    return w1, b1, w2, b2


def _reference(x, w1, b1, w2, b2):
    return jnp.maximum(x @ w1 + b1, 0.0) @ w2 + b2


if __name__ == "__main__":
    key = jax.random.PRNGKey(0)
    k_x, k_p, k_x2 = jax.random.split(key, 3)
    w1, b1, w2, b2 = init_ann_params(k_p)

    # Small batch (matches the module's toy usage): single padded tile path.
    batch = 8
    x = jax.random.normal(k_x, (batch, IN_FEATURES), jnp.float32)
    out = jax.block_until_ready(ann_forward(x, w1, b1, w2, b2))
    ref = _reference(x, w1, b1, w2, b2)
    assert out.shape == (batch, OUT_FEATURES)
    assert jnp.allclose(out, ref, atol=1e-4, rtol=1e-4)

    # Larger, non-tile-multiple batch: exercises the multi-step grid with a
    # ragged (unpadded) final block and lane-dense writeback.
    batch2 = 2500
    x2 = jax.random.normal(k_x2, (batch2, IN_FEATURES), jnp.float32)
    out2 = jax.block_until_ready(ann_forward(x2, w1, b1, w2, b2))
    ref2 = _reference(x2, w1, b1, w2, b2)
    assert out2.shape == (batch2, OUT_FEATURES)
    assert jnp.allclose(out2, ref2, atol=1e-4, rtol=1e-4)

    print("KERNEL_OK")
</pallas_src>

<mosaic_0001>
module attributes {stable_mosaic.version = 11 : i64} {
  func.func @_ann_kernel(%arg0: i32, %arg1: memref<128x17xf32, #tpu.memory_space<vmem>>, %arg2: memref<17x10xf32, #tpu.memory_space<vmem>>, %arg3: memref<1x10xf32, #tpu.memory_space<vmem>>, %arg4: memref<1x10xf32, #tpu.memory_space<vmem>>, %arg5: memref<1x1xf32, #tpu.memory_space<smem>>, %arg6: memref<1x128xf32, #tpu.memory_space<vmem>>) attributes {dimension_semantics = [#tpu.dimension_semantics<parallel>], iteration_bounds = array<i64: 1>, scalar_prefetch = 0 : i64, scratch_operands = 0 : i64, tpu.core_type = #tpu.core_type<tc>, window_params = [{transform_indices = @transform_0, window_bounds = array<i64: 128, 17>}, {pipeline_mode = #tpu.pipeline_mode<synchronous>, transform_indices = @transform_1, window_bounds = array<i64: 17, 10>}, {pipeline_mode = #tpu.pipeline_mode<synchronous>, transform_indices = @transform_2, window_bounds = array<i64: 1, 10>}, {pipeline_mode = #tpu.pipeline_mode<synchronous>, transform_indices = @transform_3, window_bounds = array<i64: 1, 10>}, {transform_indices = @transform_4, window_bounds = array<i64: 1, 1>}, {transform_indices = @transform_5, window_bounds = array<i64: 1, 128>}]} {
    %c0 = arith.constant 0 : index
    %c0_0 = arith.constant 0 : index
    %0 = vector.load %arg1[%c0, %c0_0] : memref<128x17xf32, #tpu.memory_space<vmem>>, vector<128x17xf32>
    %c0_1 = arith.constant 0 : index
    %c0_2 = arith.constant 0 : index
    %1 = vector.load %arg2[%c0_1, %c0_2] : memref<17x10xf32, #tpu.memory_space<vmem>>, vector<17x10xf32>
    %cst = arith.constant dense<0.000000e+00> : vector<128x10xf32>
    %2 = tpu.matmul %0, %1, %cst {dimension_numbers = #tpu.dot_dimension_numbers<[1], [0], [0], [1], [0, 0, 1, 1], [], []>} : vector<128x17xf32>, vector<17x10xf32>, vector<128x10xf32> -> vector<128x10xf32>
    %c0_3 = arith.constant 0 : index
    %c0_4 = arith.constant 0 : index
    %3 = vector.load %arg3[%c0_3, %c0_4] : memref<1x10xf32, #tpu.memory_space<vmem>>, vector<1x10xf32>
    %4 = vector.broadcast %3 : vector<1x10xf32> to vector<128x10xf32>
    %5 = arith.addf %2, %4 : vector<128x10xf32>
    %cst_5 = arith.constant 0.000000e+00 : f32
    %6 = vector.broadcast %cst_5 : f32 to vector<128x10xf32>
    %7 = arith.maximumf %5, %6 : vector<128x10xf32>
    %c0_6 = arith.constant 0 : index
    %c0_7 = arith.constant 0 : index
    %8 = vector.load %arg4[%c0_6, %c0_7] : memref<1x10xf32, #tpu.memory_space<vmem>>, vector<1x10xf32>
    "tpu.trace_start"() <{level = 10 : i32, message = "oh,bh->ob"}> : () -> ()
    %cst_8 = arith.constant dense<0.000000e+00> : vector<1x128xf32>
    %9 = tpu.matmul %8, %7, %cst_8 {dimension_numbers = #tpu.dot_dimension_numbers<[1], [1], [0], [0], [0, 0, 1, 0], [], []>} : vector<1x10xf32>, vector<128x10xf32>, vector<1x128xf32> -> vector<1x128xf32>
    "tpu.trace_stop"() : () -> ()
    %c0_9 = arith.constant 0 : index
    %c0_10 = arith.constant 0 : index
    %10 = memref.load %arg5[%c0_9, %c0_10] : memref<1x1xf32, #tpu.memory_space<smem>>
    %11 = vector.broadcast %10 : f32 to vector<1x128xf32>
    %12 = arith.addf %9, %11 : vector<1x128xf32>
    %c0_11 = arith.constant 0 : index
    %c0_12 = arith.constant 0 : index
    %13 = vector.load %arg6[%c0_11, %c0_12] : memref<1x128xf32, #tpu.memory_space<vmem>>, vector<1x128xf32>
    tpu.vector_store %arg6[%c0_11, %c0_12], %12 {strides = array<i32>} : memref<1x128xf32, #tpu.memory_space<vmem>>, vector<1x128xf32>,
    return
  }
  func.func @transform_0(%arg0: i32) -> (i32, i32) {
    %c0_i32 = arith.constant 0 : i32
    %c0_i32_0 = arith.constant 0 : i32
    return %arg0, %c0_i32 : i32, i32
  }
  func.func @transform_1(%arg0: i32) -> (i32, i32) {
    %c0_i32 = arith.constant 0 : i32
    %c0_i32_0 = arith.constant 0 : i32
    %c0_i32_1 = arith.constant 0 : i32
    return %c0_i32, %c0_i32_0 : i32, i32
  }
  func.func @transform_2(%arg0: i32) -> (i32, i32) {
    %c0_i32 = arith.constant 0 : i32
    %c0_i32_0 = arith.constant 0 : i32
    %c0_i32_1 = arith.constant 0 : i32
    return %c0_i32, %c0_i32_0 : i32, i32
  }
  func.func @transform_3(%arg0: i32) -> (i32, i32) {
    %c0_i32 = arith.constant 0 : i32
    %c0_i32_0 = arith.constant 0 : i32
    %c0_i32_1 = arith.constant 0 : i32
    return %c0_i32, %c0_i32_0 : i32, i32
  }
  func.func @transform_4(%arg0: i32) -> (i32, i32) {
    %c0_i32 = arith.constant 0 : i32
    %c0_i32_0 = arith.constant 0 : i32
    %c0_i32_1 = arith.constant 0 : i32
    return %c0_i32, %c0_i32_0 : i32, i32
  }
  func.func @transform_5(%arg0: i32) -> (i32, i32) {
    %c0_i32 = arith.constant 0 : i32
    %c0_i32_0 = arith.constant 0 : i32
    return %c0_i32, %arg0 : i32, i32
  }
}

</mosaic_0001>

<llo_original>
// kernel: tpu_custom_call.1
$region0: #{tpu_custom_call.1}
  #allocation0 [shape = 'u32[]', space=smem, size = 0x4, offset = 0x4, fixed_abs, tag = 'smem constant byte address 0x4 - core index']
  #allocation1 [shape = 'u32[144,128]{1,0:T(1,128)}', space=vmem, size = 0x12000, scoped, tag = 'internal scratch']
  #allocation2 [shape = 'f32[1,1]{1,0:T(1,128)S(6)}', space=smem, size = 0x200, scoped, tag = 'scoped memory for tpu_custom_call.1']
  %s0 = inlined_call_operand.vmem [shape: f32[128,17], index: 0, kind: input, shape index: {}]
  %s1 = inlined_call_operand.vmem [shape: f32[17,10], index: 1, kind: input, shape index: {}]
  %s2 = inlined_call_operand.vmem [shape: f32[1,10], index: 2, kind: input, shape index: {}]
  %s3 = inlined_call_operand.vmem [shape: f32[1,10], index: 3, kind: input, shape index: {}]
  %s4 = inlined_call_operand.<no memory space> [shape: f32[1,1], index: 4, kind: input, shape index: {}]
  %s5 = inlined_call_operand.hbm [shape: f32[1,128], index: 5, kind: output, shape index: {}]
  %s6 = sld [smem:[#allocation0]]
  $region30: #{tpu_custom_call.1} parent=0
    _
  %s8 = ssub.s32 1, %s6
  %s9 = scalar_select 0, %s8, %s6
  %10 = sst [smem:[#allocation2]] %s4
  $region1: #{tpu_custom_call.1} parent=0
    #allocation3 [shape = 'u8[512]{0}', space=vmem, size = 0x400, scoped, tag = 'output window, operand 0, single buffered']
    #allocation4 [shape = 's32[1]{0}', space=sflag, size = 0x4, scoped, tag = 'scoped memory for tpu_custom_call.1']
    %11 = vsyncpa [#allocation4], 0
    // Predicated region
    $region2: #{tpu_custom_call.1} parent=1 // pred_check
      _
    $region3: #{tpu_custom_call.1} parent=1 // pred_check_branch
      %13 = sbr.rel (0) target = $region5
    $region4: #{tpu_custom_call.1} parent=1 // pred_region
      _
    $region5: #{tpu_custom_call.1} parent=1 // pred_fallthru
      _
    // Predicated region
    $region6: #{tpu_custom_call.1} parent=1 // pred_check
      _
    $region7: #{tpu_custom_call.1} parent=1 // pred_check_branch
      %15 = sbr.rel (0) target = $region9
    $region8: #{tpu_custom_call.1} parent=1 // pred_region
      _
    $region9: #{tpu_custom_call.1} parent=1 // pred_fallthru
      _
    // Predicated region
    $region10: #{tpu_custom_call.1} parent=1 // pred_check
      _
    $region11: #{tpu_custom_call.1} parent=1 // pred_check_branch
      %17 = sbr.rel (0) target = $region13
    $region12: #{tpu_custom_call.1} parent=1 // pred_region
      _
    $region13: #{tpu_custom_call.1} parent=1 // pred_fallthru
      _
    // Predicated region
    $region14: #{tpu_custom_call.1} parent=1 // pred_check
      _
    $region15: #{tpu_custom_call.1} parent=1 // pred_check_branch
      %19 = sbr.rel (0) target = $region17
    $region16: #{tpu_custom_call.1} parent=1 // pred_region
      _
    $region17: #{tpu_custom_call.1} parent=1 // pred_fallthru
      _
    // Predicated region
    $region18: #{tpu_custom_call.1} parent=1 // pred_check
      _
    $region19: #{tpu_custom_call.1} parent=1 // pred_check_branch
      %21 = sbr.rel (0) target = $region21
    $region20: #{tpu_custom_call.1} parent=1 // pred_region
      _
    $region21: #{tpu_custom_call.1} parent=1 // pred_fallthru
      _
    %v22 = vld [vmem:[%s0] sm:$0xff]
    %v23 = vld [vmem:[%s0 + $0x8] sm:$0xff]
    %v24 = vld [vmem:[%s0 + $0x10] sm:$0xff]
    %v25 = vld [vmem:[%s0 + $0x18] sm:$0xff]
    %v26 = vld [vmem:[%s0 + $0x20] sm:$0xff]
    %v27 = vld [vmem:[%s0 + $0x28] sm:$0xff]
    %v28 = vld [vmem:[%s0 + $0x30] sm:$0xff]
    %v29 = vld [vmem:[%s0 + $0x38] sm:$0xff]
    %v30 = vld [vmem:[%s0 + $0x40] sm:$0xff]
    %v31 = vld [vmem:[%s0 + $0x48] sm:$0xff]
    %v32 = vld [vmem:[%s0 + $0x50] sm:$0xff]
    %v33 = vld [vmem:[%s0 + $0x58] sm:$0xff]
    %v34 = vld [vmem:[%s0 + $0x60] sm:$0xff]
    %v35 = vld [vmem:[%s0 + $0x68] sm:$0xff]
    %v36 = vld [vmem:[%s0 + $0x70] sm:$0xff]
    %v37 = vld [vmem:[%s0 + $0x78] sm:$0xff]
    %v38 = vld [vmem:[%s1] sm:$0xff]
    %v39 = vld [vmem:[%s1 + $0x8] sm:$0xff]
    %v40 = vld [vmem:[%s1 + $0x10] sm:$0x1]
    %v41 = vld [vmem:[%s2] sm:$0x1]
    %v43 = vlaneseq
    %v44 = vshrl.u32 %v43, 7
    %v45 = vsub.s32 0, %v44
    %v46 = vrot.slane %v41, %v45
    %vm48 = vcmask 138240
    %v50 = vsel %vm48, %v22, 0
    %v53 = vsel %vm48, %v23, 0
    %v56 = vsel %vm48, %v24, 0
    %v59 = vsel %vm48, %v25, 0
    %v62 = vsel %vm48, %v26, 0
    %v65 = vsel %vm48, %v27, 0
    %v68 = vsel %vm48, %v28, 0
    %v71 = vsel %vm48, %v29, 0
    %v74 = vsel %vm48, %v30, 0
    %v77 = vsel %vm48, %v31, 0
    %v80 = vsel %vm48, %v32, 0
    %v83 = vsel %vm48, %v33, 0
    %v86 = vsel %vm48, %v34, 0
    %v89 = vsel %vm48, %v35, 0
    %v92 = vsel %vm48, %v36, 0
    %v95 = vsel %vm48, %v37, 0
    %vm97 = vcmask 1040384
    %v99 = vsel %vm97, %v40, 0
    %101 = vmatprep.subr.mxu0 0.0
    %102 = vmatpush1.msra.mxu0 %v38
    %103 = vmatprep.subr.mxu0 0.0
    %104 = vmatpush1.msra.mxu0 %v39
    %105 = vmatprep.subr.mxu0 0.0
    %106 = vmatpush1.msra.mxu0 %v99
    %107 = vmatprep.subr.mxu0 0.0
    %108 = vmatpush1.msra.mxu0 0.0
    %109 = vmatprep.subr.mxu0 0.0
    %110 = vmatpush1.msra.mxu0 0.0
    %111 = vmatprep.subr.mxu0 0.0
    %112 = vmatpush1.msra.mxu0 0.0
    %113 = vmatprep.subr.mxu0 0.0
    %114 = vmatpush1.msra.mxu0 0.0
    %115 = vmatprep.subr.mxu0 0.0
    %116 = vmatpush1.msra.mxu0 0.0
    %117 = vmatprep.subr.mxu0 0.0
    %118 = vmatpush1.msra.mxu0 0.0
    %119 = vmatprep.subr.mxu0 0.0
    %120 = vmatpush1.msra.mxu0 0.0
    %121 = vmatprep.subr.mxu0 0.0
    %122 = vmatpush1.msra.mxu0 0.0
    %123 = vmatprep.subr.mxu0 0.0
    %124 = vmatpush1.msra.mxu0 0.0
    %125 = vmatprep.subr.mxu0 0.0
    %126 = vmatpush1.msra.mxu0 0.0
    %127 = vmatprep.subr.mxu0 0.0
    %128 = vmatpush1.msra.mxu0 0.0
    %129 = vmatprep.subr.mxu0 0.0
    %130 = vmatpush1.msra.mxu0 0.0
    %131 = vmatprep.subr.mxu0 0.0
    %132 = vmatpush1.msra.mxu0 0.0
    %133 = vmatprep.subr.mxu0 0.0
    %134 = vmatpush1.msra.mxu0 0.0
    %135 = vmatprep.subr.mxu0 0.0
    %136 = vmatpush1.msra.mxu0 0.0
    %137 = vmatprep.subr.mxu0 0.0
    %138 = vmatpush1.msra.mxu0 0.0
    %139 = vmatprep.subr.mxu0 0.0
    %140 = vmatpush1.msra.mxu0 0.0
    %141 = vmatprep.subr.mxu0 0.0
    %142 = vmatpush1.msra.mxu0 0.0
    %143 = vmatprep.subr.mxu0 0.0
    %144 = vmatpush1.msra.mxu0 0.0
    %145 = vmatprep.subr.mxu0 0.0
    %146 = vmatpush1.msra.mxu0 0.0
    %147 = vmatprep.subr.mxu0 0.0
    %148 = vmatpush1.msra.mxu0 0.0
    %149 = vmatprep.subr.mxu0 0.0
    %150 = vmatpush1.msra.mxu0 0.0
    %151 = vmatprep.subr.mxu0 0.0
    %152 = vmatpush1.msra.mxu0 0.0
    %153 = vmatprep.subr.mxu0 0.0
    %154 = vmatpush1.msra.mxu0 0.0
    %155 = vmatprep.subr.mxu0 0.0
    %156 = vmatpush1.msra.mxu0 0.0
    %157 = vmatprep.subr.mxu0 0.0
    %158 = vmatpush1.msra.mxu0 0.0
    %159 = vmatprep.subr.mxu0 0.0
    %160 = vmatpush1.msra.mxu0 0.0
    %161 = vmatprep.subr.mxu0 0.0
    %162 = vmatpush1.msra.mxu0 0.0
    %163 = vmatprep.subr.mxu0 0.0
    %164 = vmatpush1.msra.mxu0 0.0
    %165 = vmatprep.mubr.f32.mxu0 0.0
    %166 = vmatmul.mubr.f32.gmra.mrb[0].mxu0 %v50
    %v167 = vpop.f32.mrb[0].mxu0
    %v168 = vadd.f32 %v46, %v167
    %v169 = vpop.f32.mrb[0].mxu0
    %170 = vmatprep.mubr.f32.mxu0 0.0
    %171 = vmatmul.mubr.f32.gmra.mrb[0].mxu0 %v53
    %v172 = vpop.f32.mrb[0].mxu0
    %v173 = vadd.f32 %v46, %v172
    %v174 = vpop.f32.mrb[0].mxu0
    %175 = vmatprep.mubr.f32.mxu0 0.0
    %176 = vmatmul.mubr.f32.gmra.mrb[0].mxu0 %v56
    %v177 = vpop.f32.mrb[0].mxu0
    %v178 = vadd.f32 %v46, %v177
    %v179 = vpop.f32.mrb[0].mxu0
    %180 = vmatprep.mubr.f32.mxu0 0.0
    %181 = vmatmul.mubr.f32.gmra.mrb[0].mxu0 %v59
    %v182 = vpop.f32.mrb[0].mxu0
    %v183 = vadd.f32 %v46, %v182
    %v184 = vpop.f32.mrb[0].mxu0
    %185 = vmatprep.mubr.f32.mxu0 0.0
    %186 = vmatmul.mubr.f32.gmra.mrb[0].mxu0 %v62
    %v187 = vpop.f32.mrb[0].mxu0
    %v188 = vadd.f32 %v46, %v187
    %v189 = vpop.f32.mrb[0].mxu0
    %190 = vmatprep.mubr.f32.mxu0 0.0
    %191 = vmatmul.mubr.f32.gmra.mrb[0].mxu0 %v65
    %v192 = vpop.f32.mrb[0].mxu0
    %v193 = vadd.f32 %v46, %v192
    %v194 = vpop.f32.mrb[0].mxu0
    %195 = vmatprep.mubr.f32.mxu0 0.0
    %196 = vmatmul.mubr.f32.gmra.mrb[0].mxu0 %v68
    %v197 = vpop.f32.mrb[0].mxu0
    %v198 = vadd.f32 %v46, %v197
    %v199 = vpop.f32.mrb[0].mxu0
    %200 = vmatprep.mubr.f32.mxu0 0.0
    %201 = vmatmul.mubr.f32.gmra.mrb[0].mxu0 %v71
    %v202 = vpop.f32.mrb[0].mxu0
    %v203 = vadd.f32 %v46, %v202
    %v204 = vpop.f32.mrb[0].mxu0
    %205 = vmatprep.mubr.f32.mxu0 0.0
    %206 = vmatmul.mubr.f32.gmra.mrb[0].mxu0 %v74
    %v207 = vpop.f32.mrb[0].mxu0
    %v208 = vadd.f32 %v46, %v207
    %v209 = vpop.f32.mrb[0].mxu0
    %210 = vmatprep.mubr.f32.mxu0 0.0
    %211 = vmatmul.mubr.f32.gmra.mrb[0].mxu0 %v77
    %v212 = vpop.f32.mrb[0].mxu0
    %v213 = vadd.f32 %v46, %v212
    %v214 = vpop.f32.mrb[0].mxu0
    %215 = vmatprep.mubr.f32.mxu0 0.0
    %216 = vmatmul.mubr.f32.gmra.mrb[0].mxu0 %v80
    %v217 = vpop.f32.mrb[0].mxu0
    %v218 = vadd.f32 %v46, %v217
    %v219 = vpop.f32.mrb[0].mxu0
    %220 = vmatprep.mubr.f32.mxu0 0.0
    %221 = vmatmul.mubr.f32.gmra.mrb[0].mxu0 %v83
    %v222 = vpop.f32.mrb[0].mxu0
    %v223 = vadd.f32 %v46, %v222
    %v224 = vpop.f32.mrb[0].mxu0
    %225 = vmatprep.mubr.f32.mxu0 0.0
    %226 = vmatmul.mubr.f32.gmra.mrb[0].mxu0 %v86
    %v227 = vpop.f32.mrb[0].mxu0
    %v228 = vadd.f32 %v46, %v227
    %v229 = vpop.f32.mrb[0].mxu0
    %230 = vmatprep.mubr.f32.mxu0 0.0
    %231 = vmatmul.mubr.f32.gmra.mrb[0].mxu0 %v89
    %v232 = vpop.f32.mrb[0].mxu0
    %v233 = vadd.f32 %v46, %v232
    %v234 = vpop.f32.mrb[0].mxu0
    %235 = vmatprep.mubr.f32.mxu0 0.0
    %236 = vmatmul.mubr.f32.gmra.mrb[0].mxu0 %v92
    %v237 = vpop.f32.mrb[0].mxu0
    %v238 = vadd.f32 %v46, %v237
    %v239 = vpop.f32.mrb[0].mxu0
    %240 = vmatprep.mubr.f32.mxu0 0.0
    %241 = vmatmul.mubr.f32.gmra.mrb[0].mxu0 %v95
    %v242 = vpop.f32.mrb[0].mxu0
    %v243 = vadd.f32 %v46, %v242
    %v244 = vpop.f32.mrb[0].mxu0
    %245 = vdwg.mxu0
    %v246 = vmax.f32 %v168, 0.0
    %v247 = vmax.f32 %v173, 0.0
    %v248 = vmax.f32 %v178, 0.0
    %v249 = vmax.f32 %v183, 0.0
    %v250 = vmax.f32 %v188, 0.0
    %v251 = vmax.f32 %v193, 0.0
    %v252 = vmax.f32 %v198, 0.0
    %v253 = vmax.f32 %v203, 0.0
    %v254 = vmax.f32 %v208, 0.0
    %v255 = vmax.f32 %v213, 0.0
    %v256 = vmax.f32 %v218, 0.0
    %v257 = vmax.f32 %v223, 0.0
    %v258 = vmax.f32 %v228, 0.0
    %v259 = vmax.f32 %v233, 0.0
    %v260 = vmax.f32 %v238, 0.0
    %v261 = vmax.f32 %v243, 0.0
    %v262 = vld [vmem:[%s3] sm:$0x1]
    %s263 = sld [smem:[#allocation2]]
    %v264 = vstv %s263
    %vm265 = vcmask 80896
    %v267 = vsel %vm265, %v262, 0
    %v270 = vsel %vm265, %v246, 0
    %v273 = vsel %vm265, %v247, 0
    %v276 = vsel %vm265, %v248, 0
    %v279 = vsel %vm265, %v249, 0
    %v282 = vsel %vm265, %v250, 0
    %v285 = vsel %vm265, %v251, 0
    %v288 = vsel %vm265, %v252, 0
    %v291 = vsel %vm265, %v253, 0
    %v294 = vsel %vm265, %v254, 0
    %v297 = vsel %vm265, %v255, 0
    %v300 = vsel %vm265, %v256, 0
    %v303 = vsel %vm265, %v257, 0
    %v306 = vsel %vm265, %v258, 0
    %v309 = vsel %vm265, %v259, 0
    %v312 = vsel %vm265, %v260, 0
    %v315 = vsel %vm265, %v261, 0
    %317 = vmatprep.subr.mxu0 0.0
    %318 = vmatpush1.xpose.msra.mxu0 %v270
    %319 = vmatprep.subr.mxu0 0.0
    %320 = vmatpush1.xpose.msra.mxu0 %v273
    %321 = vmatprep.subr.mxu0 0.0
    %322 = vmatpush1.xpose.msra.mxu0 %v276
    %323 = vmatprep.subr.mxu0 0.0
    %324 = vmatpush1.xpose.msra.mxu0 %v279
    %325 = vmatprep.subr.mxu0 0.0
    %326 = vmatpush1.xpose.msra.mxu0 %v282
    %327 = vmatprep.subr.mxu0 0.0
    %328 = vmatpush1.xpose.msra.mxu0 %v285
    %329 = vmatprep.subr.mxu0 0.0
    %330 = vmatpush1.xpose.msra.mxu0 %v288
    %331 = vmatprep.subr.mxu0 0.0
    %332 = vmatpush1.xpose.msra.mxu0 %v291
    %333 = vmatprep.subr.mxu0 0.0
    %334 = vmatpush1.xpose.msra.mxu0 %v294
    %335 = vmatprep.subr.mxu0 0.0
    %336 = vmatpush1.xpose.msra.mxu0 %v297
    %337 = vmatprep.subr.mxu0 0.0
    %338 = vmatpush1.xpose.msra.mxu0 %v300
    %339 = vmatprep.subr.mxu0 0.0
    %340 = vmatpush1.xpose.msra.mxu0 %v303
    %341 = vmatprep.subr.mxu0 0.0
    %342 = vmatpush1.xpose.msra.mxu0 %v306
    %343 = vmatprep.subr.mxu0 0.0
    %344 = vmatpush1.xpose.msra.mxu0 %v309
    %345 = vmatprep.subr.mxu0 0.0
    %346 = vmatpush1.xpose.msra.mxu0 %v312
    %347 = vmatprep.subr.mxu0 0.0
    %348 = vmatpush1.xpose.msra.mxu0 %v315
    %349 = vmatprep.subr.mxu0 0.0
    %350 = vmatpush1.xpose.msra.mxu0 0.0
    %351 = vmatprep.subr.mxu0 0.0
    %352 = vmatpush1.xpose.msra.mxu0 0.0
    %353 = vmatprep.subr.mxu0 0.0
    %354 = vmatpush1.xpose.msra.mxu0 0.0
    %355 = vmatprep.subr.mxu0 0.0
    %356 = vmatpush1.xpose.msra.mxu0 0.0
    %357 = vmatprep.subr.mxu0 0.0
    %358 = vmatpush1.xpose.msra.mxu0 0.0
    %359 = vmatprep.subr.mxu0 0.0
    %360 = vmatpush1.xpose.msra.mxu0 0.0
    %361 = vmatprep.subr.mxu0 0.0
    %362 = vmatpush1.xpose.msra.mxu0 0.0
    %363 = vmatprep.subr.mxu0 0.0
    %364 = vmatpush1.xpose.msra.mxu0 0.0
    %365 = vmatprep.subr.mxu0 0.0
    %366 = vmatpush1.xpose.msra.mxu0 0.0
    %367 = vmatprep.subr.mxu0 0.0
    %368 = vmatpush1.xpose.msra.mxu0 0.0
    %369 = vmatprep.subr.mxu0 0.0
    %370 = vmatpush1.xpose.msra.mxu0 0.0
    %371 = vmatprep.subr.mxu0 0.0
    %372 = vmatpush1.xpose.msra.mxu0 0.0
    %373 = vmatprep.subr.mxu0 0.0
    %374 = vmatpush1.xpose.msra.mxu0 0.0
    %375 = vmatprep.subr.mxu0 0.0
    %376 = vmatpush1.xpose.msra.mxu0 0.0
    %377 = vmatprep.subr.mxu0 0.0
    %378 = vmatpush1.xpose.msra.mxu0 0.0
    %379 = vmatprep.subr.mxu0 0.0
    %380 = vmatpush1.xpose.msra.mxu0 0.0
    %381 = vmatprep.mubr.f32.mxu0 0.0
    %382 = vmatmul.mubr.f32.gmra.mrb[0].mxu0 %v267
    %v383 = vpop.f32.mrb[0].mxu0
    %v384 = vadd.f32 %v264, %v383
    %v385 = vpop.f32.mrb[0].mxu0
    %386 = vdwg.mxu0
    %387 = vst [vmem:[#allocation3] sm:$0x1] %v384
    // Predicated region
    $region22: #{tpu_custom_call.1} parent=1 // pred_check
      _
    $region23: #{tpu_custom_call.1} parent=1 // pred_check_branch
      %389 = sbr.rel (0) target = $region25
    $region24: #{tpu_custom_call.1} parent=1 // pred_region
      %s391 = ssub.s32 16, 16
      %392 = vsyncadd [#allocation4], %s391
      %s394 = sshll.u32 [#allocation3], 4
      %s395 = int_to_ptr.vmem [resolvable:$true] %s394
      %397 = dma.vmem_to_hbm [thread:$0]  %s395, 16, %s5, [#allocation4]
    $region25: #{tpu_custom_call.1} parent=1 // pred_fallthru
      _
    // Predicated region
    $region26: #{tpu_custom_call.1} parent=1 // pred_check
      _
    $region27: #{tpu_custom_call.1} parent=1 // pred_check_branch
      %399 = sbr.rel (0) target = $region29
    $region28: #{tpu_custom_call.1} parent=1 // pred_region
      %400 = dma.done [#allocation4], 16
    $region29: #{tpu_custom_call.1} parent=1 // pred_fallthru
      _
    %401 = vsyncpa [#allocation4], 1

</llo_original>
